<compile_context>
chip_gen: v5e
topology: v5e:2x2
jax: 0.10.0
libtpu: 0.0.40
codegen_flags: <defaults>
</compile_context>

<pallas_src>
import math

import jax
import jax.numpy as jnp
from jax.experimental import pallas as pl
from jax.experimental.pallas import tpu as pltpu


def _round_up(x, m):
    return ((x + m - 1) // m) * m


def _gcn_kernel(a_ref, x_ref, inv_in_ref, w1_ref, b1_ref, w2_ref, b2_ref,
                y_ref, acc_ref):
    """One (row-tile i, neighbor-tile k) grid step.

    a_ref      [TM, TK] bf16  raw 0/1 adjacency tile
    x_ref      [TK, FP] bf16  features pre-scaled by D_out^{-1/2}
    inv_in_ref [TM, 1]  f32   D_in^{-1/2} for this row tile
    w1/b1/w2/b2               GraphConv + Linear params (weights bf16, biases f32)
    y_ref      [TM, OP] f32   output tile (same block across k -> accumulator)
    acc_ref    [TM, FP] f32   VMEM accumulator for A @ X
    """
    k = pl.program_id(1)

    @pl.when(k == 0)
    def _init():
        acc_ref[...] = jnp.zeros_like(acc_ref)

    # Dominant O(N^2) contraction on the MXU: raw adjacency x pre-scaled feats.
    acc_ref[...] += jnp.dot(a_ref[...], x_ref[...],
                            preferred_element_type=jnp.float32)

    @pl.when(k == pl.num_programs(1) - 1)
    def _finalize():
        agg = acc_ref[...] * inv_in_ref[...]              # D_in^{-1/2} row scale
        h = jnp.dot(agg.astype(jnp.bfloat16), w1_ref[...],
                    preferred_element_type=jnp.float32) + b1_ref[...]
        h = jnp.maximum(h, 0.0)                           # ReLU
        y = jnp.dot(h.astype(jnp.bfloat16), w2_ref[...],
                    preferred_element_type=jnp.float32) + b2_ref[...]
        y_ref[...] = y.astype(y_ref.dtype)


def tensor_completer_forward(adj, feats, w1, b1, w2, b2,
                             *, tm_target=256, tk_target=512):
    """Forward pass: Linear(ReLU(GraphConv(A, X))).

    adj [N,N] 0/1 adjacency, feats [N,F], w1 [F,H], b1 [1,H], w2 [H,O], b2 [1,O]
    (weights stored as [in, out], i.e. PyTorch Linear weight transposed).
    """
    n, f_in = feats.shape
    hidden = w1.shape[1]
    out_dim = w2.shape[1]

    # --- degree normalization, precomputed once in the wrapper (DGL clamps >= 1)
    deg_in = jnp.sum(adj, axis=1, keepdims=True)          # [N, 1]
    deg_out = jnp.sum(adj, axis=0, keepdims=True)         # [1, N]
    inv_in = jax.lax.rsqrt(jnp.maximum(deg_in, 1.0)).astype(jnp.float32)
    inv_out = jax.lax.rsqrt(jnp.maximum(deg_out, 1.0))

    # Fold D_out^{-1/2} into the features (column scaling of A == row scaling
    # of X) so A stays exactly 0/1 and is bit-exact in bf16.
    x_scaled = feats.astype(jnp.float32) * inv_out.reshape(-1, 1)

    # --- tile / pad sizes ----------------------------------------------------
    tm = tm_target if n > tm_target else _round_up(max(n, 1), 8)
    tk = tk_target if n > tk_target else 0                # 0 -> full padded N
    pad_unit = tm if tk == 0 else (tm * tk) // math.gcd(tm, tk)
    n_pad = _round_up(n, pad_unit)
    if tk == 0:
        tk = n_pad

    fp = _round_up(f_in, 128)      # lane-dense feature width
    hp = _round_up(hidden, 128)    # lane-dense hidden width
    op = _round_up(out_dim, 128)   # lane-dense output width (no masked stores)

    def pad2(x, rows, cols):
        return jnp.pad(x, ((0, rows - x.shape[0]), (0, cols - x.shape[1])))

    a_p = pad2(adj.astype(jnp.float32), n_pad, n_pad).astype(jnp.bfloat16)
    x_p = pad2(x_scaled, n_pad, fp).astype(jnp.bfloat16)
    inv_in_p = jnp.pad(inv_in, ((0, n_pad - n), (0, 0)), constant_values=1.0)
    w1_p = pad2(w1.astype(jnp.float32), fp, hp).astype(jnp.bfloat16)
    b1_p = pad2(b1.astype(jnp.float32), 1, hp)
    w2_p = pad2(w2.astype(jnp.float32), hp, op).astype(jnp.bfloat16)
    b2_p = pad2(b2.astype(jnp.float32), 1, op)

    grid = (n_pad // tm, n_pad // tk)

    y_pad = pl.pallas_call(
        _gcn_kernel,
        out_shape=jax.ShapeDtypeStruct((n_pad, op), jnp.float32),
        grid_spec=pltpu.PrefetchScalarGridSpec(
            num_scalar_prefetch=0,
            grid=grid,
            in_specs=[
                pl.BlockSpec((tm, tk), lambda i, k: (i, k)),   # A tile
                pl.BlockSpec((tk, fp), lambda i, k: (k, 0)),   # scaled X tile
                pl.BlockSpec((tm, 1), lambda i, k: (i, 0)),    # D_in^{-1/2}
                pl.BlockSpec((fp, hp), lambda i, k: (0, 0)),   # W1
                pl.BlockSpec((1, hp), lambda i, k: (0, 0)),    # b1
                pl.BlockSpec((hp, op), lambda i, k: (0, 0)),   # W2
                pl.BlockSpec((1, op), lambda i, k: (0, 0)),    # b2
            ],
            out_specs=pl.BlockSpec((tm, op), lambda i, k: (i, 0)),
            scratch_shapes=[pltpu.VMEM((tm, fp), jnp.float32)],
        ),
        compiler_params=pltpu.CompilerParams(
            dimension_semantics=("parallel", "arbitrary"),
        ),
    )(a_p, x_p, inv_in_p, w1_p, b1_p, w2_p, b2_p)

    return y_pad[:n, :out_dim]


def _reference(adj, feats, w1, b1, w2, b2):
    deg_in = jnp.sum(adj, axis=1, keepdims=True)
    deg_out = jnp.sum(adj, axis=0, keepdims=True)
    a_norm = adj * jax.lax.rsqrt(jnp.maximum(deg_in, 1.0)) \
                 * jax.lax.rsqrt(jnp.maximum(deg_out, 1.0))
    h = jnp.maximum(a_norm @ (feats @ w1) + b1, 0.0)
    return h @ w2 + b2


if __name__ == "__main__":
    N, INPUT_DIM, HIDDEN_DIM, OUTPUT_DIM = 16, 32, 64, 8

    key = jax.random.PRNGKey(0)
    k_adj, k_feat, k_w1, k_b1, k_w2, k_b2 = jax.random.split(key, 6)

    # Deterministic symmetric adjacency (undirected), zero diagonal.
    rand = jax.random.uniform(k_adj, (N, N))
    upper = (rand > 0.6).astype(jnp.float32)
    adj = jnp.triu(upper, k=1)
    adj = adj + adj.T

    feats = jax.random.normal(k_feat, (N, INPUT_DIM), dtype=jnp.float32)
    w1 = jax.random.normal(k_w1, (INPUT_DIM, HIDDEN_DIM), dtype=jnp.float32) * 0.1
    b1 = jax.random.normal(k_b1, (1, HIDDEN_DIM), dtype=jnp.float32) * 0.01
    w2 = jax.random.normal(k_w2, (HIDDEN_DIM, OUTPUT_DIM), dtype=jnp.float32) * 0.1
    b2 = jax.random.normal(k_b2, (1, OUTPUT_DIM), dtype=jnp.float32) * 0.01

    # --- primary (toy-shape) check -------------------------------------------
    y = tensor_completer_forward(adj, feats, w1, b1, w2, b2)
    y = jax.block_until_ready(y)
    y_ref = _reference(adj, feats, w1, b1, w2, b2)
    assert y.shape == (N, OUTPUT_DIM)
    assert jnp.allclose(y, y_ref, atol=2e-2, rtol=2e-2), "Pallas output mismatch"

    # --- secondary check exercising the multi-tile accumulator path ----------
    N2 = 200
    k2_adj, k2_feat = jax.random.split(jax.random.PRNGKey(1))
    adj2 = (jax.random.uniform(k2_adj, (N2, N2)) > 0.7).astype(jnp.float32)
    adj2 = adj2 * (1.0 - jnp.eye(N2, dtype=jnp.float32))
    feats2 = jax.random.normal(k2_feat, (N2, INPUT_DIM), dtype=jnp.float32)

    y2 = tensor_completer_forward(adj2, feats2, w1, b1, w2, b2,
                                  tm_target=64, tk_target=128)   # grid (4, 2)
    y2 = jax.block_until_ready(y2)
    y2_ref = _reference(adj2, feats2, w1, b1, w2, b2)
    assert y2.shape == (N2, OUTPUT_DIM)
    assert jnp.allclose(y2, y2_ref, atol=2e-2, rtol=2e-2), "tiled path mismatch"

    print("KERNEL_OK")
</pallas_src>

<mosaic_0001>
module attributes {stable_mosaic.version = 11 : i64} {
  func.func @_gcn_kernel(%arg0: i32, %arg1: i32, %arg2: memref<16x16xbf16, #tpu.memory_space<vmem>>, %arg3: memref<16x128xbf16, #tpu.memory_space<vmem>>, %arg4: memref<16x1xf32, #tpu.memory_space<vmem>>, %arg5: memref<128x128xbf16, #tpu.memory_space<vmem>>, %arg6: memref<1x128xf32, #tpu.memory_space<vmem>>, %arg7: memref<128x128xbf16, #tpu.memory_space<vmem>>, %arg8: memref<1x128xf32, #tpu.memory_space<vmem>>, %arg9: memref<16x128xf32, #tpu.memory_space<vmem>>, %arg10: memref<16x128xf32, #tpu.memory_space<vmem>>) attributes {dimension_semantics = [#tpu.dimension_semantics<parallel>, #tpu.dimension_semantics<arbitrary>], iteration_bounds = array<i64: 1, 1>, scalar_prefetch = 0 : i64, scratch_operands = 1 : i64, tpu.core_type = #tpu.core_type<tc>, window_params = [{transform_indices = @transform_0, window_bounds = array<i64: 16, 16>}, {transform_indices = @transform_1, window_bounds = array<i64: 16, 128>}, {transform_indices = @transform_2, window_bounds = array<i64: 16, 1>}, {pipeline_mode = #tpu.pipeline_mode<synchronous>, transform_indices = @transform_3, window_bounds = array<i64: 128, 128>}, {pipeline_mode = #tpu.pipeline_mode<synchronous>, transform_indices = @transform_4, window_bounds = array<i64: 1, 128>}, {pipeline_mode = #tpu.pipeline_mode<synchronous>, transform_indices = @transform_5, window_bounds = array<i64: 128, 128>}, {pipeline_mode = #tpu.pipeline_mode<synchronous>, transform_indices = @transform_6, window_bounds = array<i64: 1, 128>}, {transform_indices = @transform_7, window_bounds = array<i64: 16, 128>}]} {
    %c0_i32 = arith.constant 0 : i32
    %0 = arith.cmpi eq, %arg1, %c0_i32 : i32
    %1 = arith.extui %0 : i1 to i32
    %c0_i32_0 = arith.constant 0 : i32
    %2 = arith.cmpi ne, %1, %c0_i32_0 : i32
    scf.if %2 {
      %cst_10 = arith.constant 0.000000e+00 : f32
      %12 = vector.broadcast %cst_10 : f32 to vector<16x128xf32>
      %c0_11 = arith.constant 0 : index
      %c0_12 = arith.constant 0 : index
      %13 = vector.load %arg10[%c0_11, %c0_12] : memref<16x128xf32, #tpu.memory_space<vmem>>, vector<16x128xf32>
      tpu.vector_store %arg10[%c0_11, %c0_12], %12 {strides = array<i32>} : memref<16x128xf32, #tpu.memory_space<vmem>>, vector<16x128xf32>,
    } else {
    }
    %c0 = arith.constant 0 : index
    %c0_1 = arith.constant 0 : index
    %3 = vector.load %arg10[%c0, %c0_1] : memref<16x128xf32, #tpu.memory_space<vmem>>, vector<16x128xf32>
    %c0_2 = arith.constant 0 : index
    %c0_3 = arith.constant 0 : index
    %4 = vector.load %arg2[%c0_2, %c0_3] : memref<16x16xbf16, #tpu.memory_space<vmem>>, vector<16x16xbf16>
    %c0_4 = arith.constant 0 : index
    %c0_5 = arith.constant 0 : index
    %5 = vector.load %arg3[%c0_4, %c0_5] : memref<16x128xbf16, #tpu.memory_space<vmem>>, vector<16x128xbf16>
    %cst = arith.constant dense<0.000000e+00> : vector<16x128xf32>
    %6 = tpu.matmul %4, %5, %cst {dimension_numbers = #tpu.dot_dimension_numbers<[1], [0], [0], [1], [0, 0, 1, 1], [], []>} : vector<16x16xbf16>, vector<16x128xbf16>, vector<16x128xf32> -> vector<16x128xf32>
    %7 = arith.addf %3, %6 : vector<16x128xf32>
    %c0_6 = arith.constant 0 : index
    %c0_7 = arith.constant 0 : index
    %8 = vector.load %arg10[%c0_6, %c0_7] : memref<16x128xf32, #tpu.memory_space<vmem>>, vector<16x128xf32>
    tpu.vector_store %arg10[%c0_6, %c0_7], %7 {strides = array<i32>} : memref<16x128xf32, #tpu.memory_space<vmem>>, vector<16x128xf32>,
    %c0_i32_8 = arith.constant 0 : i32
    %9 = arith.cmpi eq, %arg1, %c0_i32_8 : i32
    %10 = arith.extui %9 : i1 to i32
    %c0_i32_9 = arith.constant 0 : i32
    %11 = arith.cmpi ne, %10, %c0_i32_9 : i32
    scf.if %11 {
      %c0_10 = arith.constant 0 : index
      %c0_11 = arith.constant 0 : index
      %12 = vector.load %arg10[%c0_10, %c0_11] : memref<16x128xf32, #tpu.memory_space<vmem>>, vector<16x128xf32>
      %c0_12 = arith.constant 0 : index
      %c0_13 = arith.constant 0 : index
      %13 = vector.load %arg4[%c0_12, %c0_13] : memref<16x1xf32, #tpu.memory_space<vmem>>, vector<16x1xf32>
      %14 = vector.broadcast %13 : vector<16x1xf32> to vector<16x128xf32>
      %15 = arith.mulf %12, %14 : vector<16x128xf32>
      %16 = arith.truncf %15 : vector<16x128xf32> to vector<16x128xbf16>
      %c0_14 = arith.constant 0 : index
      %c0_15 = arith.constant 0 : index
      %17 = vector.load %arg5[%c0_14, %c0_15] : memref<128x128xbf16, #tpu.memory_space<vmem>>, vector<128x128xbf16>
      %cst_16 = arith.constant dense<0.000000e+00> : vector<16x128xf32>
      %18 = tpu.matmul %16, %17, %cst_16 {dimension_numbers = #tpu.dot_dimension_numbers<[1], [0], [0], [1], [0, 0, 1, 1], [], []>} : vector<16x128xbf16>, vector<128x128xbf16>, vector<16x128xf32> -> vector<16x128xf32>
      %c0_17 = arith.constant 0 : index
      %c0_18 = arith.constant 0 : index
      %19 = vector.load %arg6[%c0_17, %c0_18] : memref<1x128xf32, #tpu.memory_space<vmem>>, vector<1x128xf32>
      %20 = vector.broadcast %19 : vector<1x128xf32> to vector<16x128xf32>
      %21 = arith.addf %18, %20 : vector<16x128xf32>
      %cst_19 = arith.constant 0.000000e+00 : f32
      %22 = vector.broadcast %cst_19 : f32 to vector<16x128xf32>
      %23 = arith.maximumf %21, %22 : vector<16x128xf32>
      %24 = arith.truncf %23 : vector<16x128xf32> to vector<16x128xbf16>
      %c0_20 = arith.constant 0 : index
      %c0_21 = arith.constant 0 : index
      %25 = vector.load %arg7[%c0_20, %c0_21] : memref<128x128xbf16, #tpu.memory_space<vmem>>, vector<128x128xbf16>
      %cst_22 = arith.constant dense<0.000000e+00> : vector<16x128xf32>
      %26 = tpu.matmul %24, %25, %cst_22 {dimension_numbers = #tpu.dot_dimension_numbers<[1], [0], [0], [1], [0, 0, 1, 1], [], []>} : vector<16x128xbf16>, vector<128x128xbf16>, vector<16x128xf32> -> vector<16x128xf32>
      %c0_23 = arith.constant 0 : index
      %c0_24 = arith.constant 0 : index
      %27 = vector.load %arg8[%c0_23, %c0_24] : memref<1x128xf32, #tpu.memory_space<vmem>>, vector<1x128xf32>
      %28 = vector.broadcast %27 : vector<1x128xf32> to vector<16x128xf32>
      %29 = arith.addf %26, %28 : vector<16x128xf32>
      %c0_25 = arith.constant 0 : index
      %c0_26 = arith.constant 0 : index
      %30 = vector.load %arg9[%c0_25, %c0_26] : memref<16x128xf32, #tpu.memory_space<vmem>>, vector<16x128xf32>
      tpu.vector_store %arg9[%c0_25, %c0_26], %29 {strides = array<i32>} : memref<16x128xf32, #tpu.memory_space<vmem>>, vector<16x128xf32>,
    } else {
    }
    return
  }
  func.func @transform_0(%arg0: i32, %arg1: i32) -> (i32, i32) {
    %c0_i32 = arith.constant 0 : i32
    return %arg0, %arg1 : i32, i32
  }
  func.func @transform_1(%arg0: i32, %arg1: i32) -> (i32, i32) {
    %c0_i32 = arith.constant 0 : i32
    %c0_i32_0 = arith.constant 0 : i32
    return %arg1, %c0_i32 : i32, i32
  }
  func.func @transform_2(%arg0: i32, %arg1: i32) -> (i32, i32) {
    %c0_i32 = arith.constant 0 : i32
    %c0_i32_0 = arith.constant 0 : i32
    return %arg0, %c0_i32 : i32, i32
  }
  func.func @transform_3(%arg0: i32, %arg1: i32) -> (i32, i32) {
    %c0_i32 = arith.constant 0 : i32
    %c0_i32_0 = arith.constant 0 : i32
    %c0_i32_1 = arith.constant 0 : i32
    return %c0_i32, %c0_i32_0 : i32, i32
  }
  func.func @transform_4(%arg0: i32, %arg1: i32) -> (i32, i32) {
    %c0_i32 = arith.constant 0 : i32
    %c0_i32_0 = arith.constant 0 : i32
    %c0_i32_1 = arith.constant 0 : i32
    return %c0_i32, %c0_i32_0 : i32, i32
  }
  func.func @transform_5(%arg0: i32, %arg1: i32) -> (i32, i32) {
    %c0_i32 = arith.constant 0 : i32
    %c0_i32_0 = arith.constant 0 : i32
    %c0_i32_1 = arith.constant 0 : i32
    return %c0_i32, %c0_i32_0 : i32, i32
  }
  func.func @transform_6(%arg0: i32, %arg1: i32) -> (i32, i32) {
    %c0_i32 = arith.constant 0 : i32
    %c0_i32_0 = arith.constant 0 : i32
    %c0_i32_1 = arith.constant 0 : i32
    return %c0_i32, %c0_i32_0 : i32, i32
  }
  func.func @transform_7(%arg0: i32, %arg1: i32) -> (i32, i32) {
    %c0_i32 = arith.constant 0 : i32
    %c0_i32_0 = arith.constant 0 : i32
    return %arg0, %c0_i32 : i32, i32
  }
}

</mosaic_0001>

<llo_original>
// kernel: tpu_custom_call.1
$region0: #{tpu_custom_call.1}
  #allocation0 [shape = 'u32[]', space=smem, size = 0x4, offset = 0x4, fixed_abs, tag = 'smem constant byte address 0x4 - core index']
  #allocation1 [shape = 'u32[72,128]{1,0:T(1,128)}', space=vmem, size = 0x9000, scoped, tag = 'internal scratch']
  #allocation2 [shape = 'f32[16,128]{1,0:T(8,128)}', space=vmem, size = 0x2000, scoped, tag = 'scratch operand']
  %s0 = inlined_call_operand.vmem [shape: bf16[16,16], index: 0, kind: input, shape index: {}]
  %s1 = inlined_call_operand.vmem [shape: bf16[16,128], index: 1, kind: input, shape index: {}]
  %s2 = inlined_call_operand.vmem [shape: f32[16,1], index: 2, kind: input, shape index: {}]
  %s3 = inlined_call_operand.hbm [shape: bf16[128,128], index: 3, kind: input, shape index: {}]
  %s4 = inlined_call_operand.vmem [shape: f32[1,128], index: 4, kind: input, shape index: {}]
  %s5 = inlined_call_operand.hbm [shape: bf16[128,128], index: 5, kind: input, shape index: {}]
  %s6 = inlined_call_operand.vmem [shape: f32[1,128], index: 6, kind: input, shape index: {}]
  %s7 = inlined_call_operand.hbm [shape: f32[16,128], index: 7, kind: output, shape index: {}]
  %s8 = sld [smem:[#allocation0]]
  $region54: #{tpu_custom_call.1} parent=0
    _
  %s10 = ssub.s32 1, %s8
  %s11 = scalar_select 0, %s10, %s8
  $region1: #{tpu_custom_call.1} parent=0
    #allocation3 [shape = 'u8[32768]{0}', space=vmem, size = 0x8000, scoped, tag = 'input window, operand 3, single buffered']
    #allocation4 [shape = 's32[1]{0}', space=sflag, size = 0x4, scoped, tag = 'scoped memory for tpu_custom_call.1']
    #allocation5 [shape = 's32[1]{0}', space=sflag, size = 0x4, scoped, tag = 'scoped memory for tpu_custom_call.1']
    #allocation6 [shape = 'u8[32768]{0}', space=vmem, size = 0x8000, scoped, tag = 'input window, operand 5, single buffered']
    #allocation7 [shape = 's32[1]{0}', space=sflag, size = 0x4, scoped, tag = 'scoped memory for tpu_custom_call.1']
    #allocation8 [shape = 'u8[8192]{0}', space=vmem, size = 0x2000, scoped, tag = 'output window, operand 0, single buffered']
    %12 = vsyncpa [#allocation4], 0
    %13 = vsyncpa [#allocation7], 0
    %14 = vsyncpa [#allocation5], 0
    // Predicated region
    $region2: #{tpu_custom_call.1} parent=1 // pred_check
      _
    $region3: #{tpu_custom_call.1} parent=1 // pred_check_branch
      %16 = sbr.rel (0) target = $region5
    $region4: #{tpu_custom_call.1} parent=1 // pred_region
      _
    $region5: #{tpu_custom_call.1} parent=1 // pred_fallthru
      _
    // Predicated region
    $region6: #{tpu_custom_call.1} parent=1 // pred_check
      _
    $region7: #{tpu_custom_call.1} parent=1 // pred_check_branch
      %18 = sbr.rel (0) target = $region9
    $region8: #{tpu_custom_call.1} parent=1 // pred_region
      _
    $region9: #{tpu_custom_call.1} parent=1 // pred_fallthru
      _
    // Predicated region
    $region10: #{tpu_custom_call.1} parent=1 // pred_check
      _
    $region11: #{tpu_custom_call.1} parent=1 // pred_check_branch
      %20 = sbr.rel (0) target = $region13
    $region12: #{tpu_custom_call.1} parent=1 // pred_region
      _
    $region13: #{tpu_custom_call.1} parent=1 // pred_fallthru
      _
    // Predicated region
    $region14: #{tpu_custom_call.1} parent=1 // pred_check
      _
    $region15: #{tpu_custom_call.1} parent=1 // pred_check_branch
      %22 = sbr.rel (0) target = $region17
    $region16: #{tpu_custom_call.1} parent=1 // pred_region
      %24 = vsyncadd [#allocation4], 0
      %s25 = sshll.u32 %s3, 4
      %s26 = int_to_ptr.hbm [resolvable:$true] %s25
      %s27 = sshll.u32 [#allocation3], 4
      %s28 = int_to_ptr.vmem [resolvable:$true] %s27
      %33 = dma.hbm_to_vmem [thread:$0]  %s26, 1024, %s28, [#allocation4], 64, 64, 4
    $region17: #{tpu_custom_call.1} parent=1 // pred_fallthru
      _
    // Predicated region
    $region18: #{tpu_custom_call.1} parent=1 // pred_check
      _
    $region19: #{tpu_custom_call.1} parent=1 // pred_check_branch
      %35 = sbr.rel (0) target = $region21
    $region20: #{tpu_custom_call.1} parent=1 // pred_region
      _
    $region21: #{tpu_custom_call.1} parent=1 // pred_fallthru
      _
    // Predicated region
    $region22: #{tpu_custom_call.1} parent=1 // pred_check
      _
    $region23: #{tpu_custom_call.1} parent=1 // pred_check_branch
      %37 = sbr.rel (0) target = $region25
    $region24: #{tpu_custom_call.1} parent=1 // pred_region
      %39 = vsyncadd [#allocation7], 0
      %s40 = sshll.u32 %s5, 4
      %s41 = int_to_ptr.hbm [resolvable:$true] %s40
      %s42 = sshll.u32 [#allocation6], 4
      %s43 = int_to_ptr.vmem [resolvable:$true] %s42
      %48 = dma.hbm_to_vmem [thread:$0]  %s41, 1024, %s43, [#allocation7], 64, 64, 4
    $region25: #{tpu_custom_call.1} parent=1 // pred_fallthru
      _
    // Predicated region
    $region26: #{tpu_custom_call.1} parent=1 // pred_check
      _
    $region27: #{tpu_custom_call.1} parent=1 // pred_check_branch
      %50 = sbr.rel (0) target = $region29
    $region28: #{tpu_custom_call.1} parent=1 // pred_region
      _
    $region29: #{tpu_custom_call.1} parent=1 // pred_fallthru
      _
    // Predicated region
    $region30: #{tpu_custom_call.1} parent=1 // pred_check
      _
    $region31: #{tpu_custom_call.1} parent=1 // pred_check_branch
      %52 = sbr.rel (0) target = $region33
    $region32: #{tpu_custom_call.1} parent=1 // pred_region
      %54 = dma.done [#allocation4], 1024
    $region33: #{tpu_custom_call.1} parent=1 // pred_fallthru
      _
    // Predicated region
    $region34: #{tpu_custom_call.1} parent=1 // pred_check
      _
    $region35: #{tpu_custom_call.1} parent=1 // pred_check_branch
      %56 = sbr.rel (0) target = $region37
    $region36: #{tpu_custom_call.1} parent=1 // pred_region
      %58 = dma.done [#allocation7], 1024
    $region37: #{tpu_custom_call.1} parent=1 // pred_fallthru
      _
    %p60 = scmp.eq.s32.totalorder 0, 0
    // Predicated region
    $region38: #{tpu_custom_call.1} parent=1 // pred_check
      %p61 = pneg %p60
    $region39: #{tpu_custom_call.1} parent=1 // pred_check_branch
      %63 = sbr.rel (%p61) target = $region41
    $region40: #{tpu_custom_call.1} parent=1 // pred_region
      %64 = vst [vmem:[#allocation2] sm:$0xff] 0.0
      %65 = vst [vmem:[#allocation2 + $0x8] sm:$0xff] 0.0
    $region41: #{tpu_custom_call.1} parent=1 // pred_fallthru
      _
    %v66 = vld [vmem:[#allocation2] sm:$0xff]
    %v67 = vld [vmem:[#allocation2 + $0x8] sm:$0xff]
    %v68 = vld [vmem:[%s0] sm:$0xf]
    %v69 = vld [vmem:[%s0 + $0x4] sm:$0xf]
    %v70 = vld [vmem:[%s1] sm:$0xf]
    %v71 = vld [vmem:[%s1 + $0x4] sm:$0xf]
    %v74 = vunpack.c.l.b16 %v68
    %v75 = vunpack.c.l.b16 %v69
    %v76 = vpack.c.b16 %v75, %v74
    %v79 = vunpack.c.l.b16 %v70
    %v80 = vunpack.c.l.b16 %v71
    %v81 = vpack.c.b16 %v80, %v79
    %vm83 = vcmask 130048
    %v85 = vsel %vm83, %v76, 0
    %87 = vmatpush.bf16.msra.mxu0 0
    %88 = vmatpush.bf16.msra.mxu0 0
    %89 = vmatpush.bf16.msra.mxu0 0
    %90 = vmatpush.bf16.msra.mxu0 0
    %91 = vmatpush.bf16.msra.mxu0 0
    %92 = vmatpush.bf16.msra.mxu0 0
    %93 = vmatpush.bf16.msra.mxu0 0
    %94 = vmatpush.bf16.msra.mxu0 %v81
    %95 = vmatmul.bf16.gmra.mxu0 %v85
    %v96 = vpop.f32.mrf.mxu0
    %v97 = vadd.f32 0.0, %v96
    %v98 = vpop.f32.mrf.mxu0
    %v99 = vadd.f32 0.0, %v98
    %100 = vdwg.mxu0
    %v101 = vadd.f32 %v66, %v97
    %v102 = vadd.f32 %v67, %v99
    %103 = vst [vmem:[#allocation2] sm:$0xff] %v101
    %104 = vst [vmem:[#allocation2 + $0x8] sm:$0xff] %v102
    // Predicated region
    $region42: #{tpu_custom_call.1} parent=1 // pred_check
      %p105 = pneg %p60
    $region43: #{tpu_custom_call.1} parent=1 // pred_check_branch
      %107 = sbr.rel (%p105) target = $region45
    $region44: #{tpu_custom_call.1} parent=1 // pred_region
      %v108 = vld [vmem:[#allocation2] sm:$0xff]
      %v109 = vld [vmem:[#allocation2 + $0x8] sm:$0xff]
      %v110 = vld [vmem:[%s2] sm:$0xff]
      %v111 = vld [vmem:[%s2 + $0x8] sm:$0xff]
      %113 = vset.pattern.permute.xlu0 0
      %114 = vperm.xlu0 %113, %v110
      %v115 = vpop.permute.xlu0 %114
      %118 = vset.pattern.permute.xlu0 0
      %119 = vperm.xlu0 %118, %v111
      %v120 = vpop.permute.xlu0 %119
      %v122 = vmul.f32 %v108, %v115
      %v123 = vmul.f32 %v109, %v120
      %v124 = vpack.c.bf16 %v123, %v122
      %v125 = vld [vmem:[#allocation3] sm:$0xf]
      %v126 = vld [vmem:[#allocation3 + $0x4] sm:$0xf]
      %v127 = vld [vmem:[#allocation3 + $0x8] sm:$0xf]
      %v128 = vld [vmem:[#allocation3 + $0xc] sm:$0xf]
      %v129 = vld [vmem:[#allocation3 + $0x10] sm:$0xf]
      %v130 = vld [vmem:[#allocation3 + $0x14] sm:$0xf]
      %v131 = vld [vmem:[#allocation3 + $0x18] sm:$0xf]
      %v132 = vld [vmem:[#allocation3 + $0x1c] sm:$0xf]
      %v133 = vld [vmem:[#allocation3 + $0x20] sm:$0xf]
      %v134 = vld [vmem:[#allocation3 + $0x24] sm:$0xf]
      %v135 = vld [vmem:[#allocation3 + $0x28] sm:$0xf]
      %v136 = vld [vmem:[#allocation3 + $0x2c] sm:$0xf]
      %v137 = vld [vmem:[#allocation3 + $0x30] sm:$0xf]
      %v138 = vld [vmem:[#allocation3 + $0x34] sm:$0xf]
      %v139 = vld [vmem:[#allocation3 + $0x38] sm:$0xf]
      %v140 = vld [vmem:[#allocation3 + $0x3c] sm:$0xf]
      %v141 = vld [vmem:[%s4] sm:$0x1]
      %v143 = vperm.slane %v141, 0
      %v161 = vunpack.c.l.b16 %v125
      %v162 = vunpack.c.l.b16 %v126
      %v163 = vunpack.c.l.b16 %v127
      %v164 = vunpack.c.l.b16 %v128
      %v165 = vunpack.c.l.b16 %v129
      %v166 = vunpack.c.l.b16 %v130
      %v167 = vunpack.c.l.b16 %v131
      %v168 = vunpack.c.l.b16 %v132
      %v169 = vunpack.c.l.b16 %v133
      %v170 = vunpack.c.l.b16 %v134
      %v171 = vunpack.c.l.b16 %v135
      %v172 = vunpack.c.l.b16 %v136
      %v173 = vunpack.c.l.b16 %v137
      %v174 = vunpack.c.l.b16 %v138
      %v175 = vunpack.c.l.b16 %v139
      %v176 = vunpack.c.l.b16 %v140
      %v177 = vpack.c.b16 %v162, %v161
      %v178 = vpack.c.b16 %v164, %v163
      %v179 = vpack.c.b16 %v166, %v165
      %v180 = vpack.c.b16 %v168, %v167
      %v181 = vpack.c.b16 %v170, %v169
      %v182 = vpack.c.b16 %v172, %v171
      %v183 = vpack.c.b16 %v174, %v173
      %v184 = vpack.c.b16 %v176, %v175
      %193 = vmatpush.bf16.msra.mxu0 %v184
      %194 = vmatpush.bf16.msra.mxu0 %v183
      %195 = vmatpush.bf16.msra.mxu0 %v182
      %196 = vmatpush.bf16.msra.mxu0 %v181
      %197 = vmatpush.bf16.msra.mxu0 %v180
      %198 = vmatpush.bf16.msra.mxu0 %v179
      %199 = vmatpush.bf16.msra.mxu0 %v178
      %200 = vmatpush.bf16.msra.mxu0 %v177
      %201 = vmatmul.bf16.gmra.mxu0 %v124
      %v202 = vpop.f32.mrf.mxu0
      %v203 = vadd.f32 %v143, %v202
      %v204 = vpop.f32.mrf.mxu0
      %v205 = vadd.f32 %v143, %v204
      %206 = vdwg.mxu0
      %v207 = vmax.f32 %v203, 0.0
      %v208 = vmax.f32 %v205, 0.0
      %v209 = vpack.c.bf16 %v208, %v207
      %v210 = vld [vmem:[#allocation6] sm:$0xf]
      %v211 = vld [vmem:[#allocation6 + $0x4] sm:$0xf]
      %v212 = vld [vmem:[#allocation6 + $0x8] sm:$0xf]
      %v213 = vld [vmem:[#allocation6 + $0xc] sm:$0xf]
      %v214 = vld [vmem:[#allocation6 + $0x10] sm:$0xf]
      %v215 = vld [vmem:[#allocation6 + $0x14] sm:$0xf]
      %v216 = vld [vmem:[#allocation6 + $0x18] sm:$0xf]
      %v217 = vld [vmem:[#allocation6 + $0x1c] sm:$0xf]
      %v218 = vld [vmem:[#allocation6 + $0x20] sm:$0xf]
      %v219 = vld [vmem:[#allocation6 + $0x24] sm:$0xf]
      %v220 = vld [vmem:[#allocation6 + $0x28] sm:$0xf]
      %v221 = vld [vmem:[#allocation6 + $0x2c] sm:$0xf]
      %v222 = vld [vmem:[#allocation6 + $0x30] sm:$0xf]
      %v223 = vld [vmem:[#allocation6 + $0x34] sm:$0xf]
      %v224 = vld [vmem:[#allocation6 + $0x38] sm:$0xf]
      %v225 = vld [vmem:[#allocation6 + $0x3c] sm:$0xf]
      %v226 = vld [vmem:[%s6] sm:$0x1]
      %v228 = vperm.slane %v226, 0
      %v246 = vunpack.c.l.b16 %v210
      %v247 = vunpack.c.l.b16 %v211
      %v248 = vunpack.c.l.b16 %v212
      %v249 = vunpack.c.l.b16 %v213
      %v250 = vunpack.c.l.b16 %v214
      %v251 = vunpack.c.l.b16 %v215
      %v252 = vunpack.c.l.b16 %v216
      %v253 = vunpack.c.l.b16 %v217
      %v254 = vunpack.c.l.b16 %v218
      %v255 = vunpack.c.l.b16 %v219
      %v256 = vunpack.c.l.b16 %v220
      %v257 = vunpack.c.l.b16 %v221
      %v258 = vunpack.c.l.b16 %v222
      %v259 = vunpack.c.l.b16 %v223
      %v260 = vunpack.c.l.b16 %v224
      %v261 = vunpack.c.l.b16 %v225
      %v262 = vpack.c.b16 %v247, %v246
      %v263 = vpack.c.b16 %v249, %v248
      %v264 = vpack.c.b16 %v251, %v250
      %v265 = vpack.c.b16 %v253, %v252
      %v266 = vpack.c.b16 %v255, %v254
      %v267 = vpack.c.b16 %v257, %v256
      %v268 = vpack.c.b16 %v259, %v258
      %v269 = vpack.c.b16 %v261, %v260
      %278 = vmatpush.bf16.msra.mxu0 %v269
      %279 = vmatpush.bf16.msra.mxu0 %v268
      %280 = vmatpush.bf16.msra.mxu0 %v267
      %281 = vmatpush.bf16.msra.mxu0 %v266
      %282 = vmatpush.bf16.msra.mxu0 %v265
      %283 = vmatpush.bf16.msra.mxu0 %v264
      %284 = vmatpush.bf16.msra.mxu0 %v263
      %285 = vmatpush.bf16.msra.mxu0 %v262
      %286 = vmatmul.bf16.gmra.mxu0 %v209
      %v287 = vpop.f32.mrf.mxu0
      %v288 = vadd.f32 %v228, %v287
      %v289 = vpop.f32.mrf.mxu0
      %v290 = vadd.f32 %v228, %v289
      %291 = vdwg.mxu0
      %292 = vst [vmem:[#allocation8] sm:$0xff] %v288
      %293 = vst [vmem:[#allocation8 + $0x8] sm:$0xff] %v290
    $region45: #{tpu_custom_call.1} parent=1 // pred_fallthru
      _
    // Predicated region
    $region46: #{tpu_custom_call.1} parent=1 // pred_check
      _
    $region47: #{tpu_custom_call.1} parent=1 // pred_check_branch
      %295 = sbr.rel (0) target = $region49
    $region48: #{tpu_custom_call.1} parent=1 // pred_region
      %297 = vsyncadd [#allocation5], 0
      %s298 = sshll.u32 [#allocation8], 4
      %s299 = int_to_ptr.vmem [resolvable:$true] %s298
      %s300 = sshll.u32 %s7, 4
      %s301 = int_to_ptr.hbm [resolvable:$true] %s300
      %306 = dma.vmem_to_hbm [thread:$0]  %s299, 256, %s301, [#allocation5], 128, 128, 8
    $region49: #{tpu_custom_call.1} parent=1 // pred_fallthru
      _
    // Predicated region
    $region50: #{tpu_custom_call.1} parent=1 // pred_check
      _
    $region51: #{tpu_custom_call.1} parent=1 // pred_check_branch
      %308 = sbr.rel (0) target = $region53
    $region52: #{tpu_custom_call.1} parent=1 // pred_region
      %310 = dma.done [#allocation5], 256
    $region53: #{tpu_custom_call.1} parent=1 // pred_fallthru
      _
    %311 = vsyncpa [#allocation4], 1
    %312 = vsyncpa [#allocation7], 1
    %313 = vsyncpa [#allocation5], 1

</llo_original>
